<compile_context>
chip_gen: v6e
topology: v6e:2x2x1
jax: 0.10.0
libtpu: 0.0.40
codegen_flags: <defaults>
</compile_context>

<pallas_src>
import jax
import jax.numpy as jnp
from jax.experimental import pallas as pl
from jax.experimental.pallas import tpu as pltpu


def _round_up(x, m):
    return ((x + m - 1) // m) * m


def _mlp_kernel(z_ref, w1t_ref, b1_ref, w2t_ref, b2_ref, ot_ref):
    """One batch tile: out^T = W2^T @ ReLU(W1^T @ z^T + b1) + b2.

    z arrives in its natural (TB, D) f32 layout; the transpose is folded into
    the first matmul by contracting the D axes of both operands (MXU handles
    the 'transposed RHS' form directly, no separate HBM transpose pass).
    """
    zb = z_ref[...].astype(jnp.bfloat16)                       # (TB, D) bf16
    # h^T = W1^T @ z^T : contract D of (HP, D) with D of (TB, D) -> (HP, TB)
    h = jax.lax.dot_general(
        w1t_ref[...], zb,
        dimension_numbers=(((1,), (1,)), ((), ())),
        preferred_element_type=jnp.float32)
    h = jnp.maximum(h + b1_ref[...], 0.0)                      # f32 bias + ReLU (v5e-safe)
    # out^T = W2^T @ h^T : (TP, HP) @ (HP, TB) -> (TP, TB); lane axis = batch.
    o = jnp.dot(w2t_ref[...], h.astype(jnp.bfloat16),
                preferred_element_type=jnp.float32)
    ot_ref[...] = (o + b2_ref[...]).astype(ot_ref.dtype)


def _pick_block_b(batch, block_b):
    """Pick the batch tile (multiple of 128, <= batch, >=2 grid steps if possible).

    `batch` is already >= 128 here.
    """
    if block_b is None:
        # 16K-64K rows/step amortizes the ~0.35 us fixed grid-step overhead
        # against >~1 us of useful HBM DMA; scale down for smaller batches.
        tb = min(64 * 1024, max(16 * 1024, _round_up(pl.cdiv(batch, 8), 128)))
    else:
        tb = _round_up(block_b, 128)
    tb = min(tb, max(128, (batch // 128) * 128))          # block must fit in array
    if batch > 128:
        # Keep >=2 grid steps so v7x's two TensorCores both get work on the
        # "parallel" batch axis (neutral on v5e/v6e).
        tb = min(tb, max(128, 128 * ((batch - 1) // 128)))
    return tb


def _turbine_discriminator_pallas(z, w1, b1, w2, b2, *, block_b=None,
                                  out_transposed=False):
    B, D = z.shape
    H = w1.shape[1]
    T = w2.shape[1]

    HP = _round_up(H, 128)      # hidden width padded to the 128-lane axis
    TP = _round_up(T, 8)        # turbine dim lives on sublanes -> pad to 8

    # Stream z in its natural layout.  Pallas masks the ragged final batch
    # tile, so no wrapper-side pad copy of z is needed; only pad when the
    # whole batch is smaller than a single 128-row tile.
    if B < 128:
        z_in = jnp.pad(z, ((0, 128 - B), (0, 0)))
        B_io = 128
    else:
        z_in = z
        B_io = B

    TB = _pick_block_b(B_io, block_b)
    grid = (pl.cdiv(B_io, TB),)

    # Padded, transposed bf16 weights + f32 biases (VMEM-resident across tiles).
    w1t = jnp.zeros((HP, D), jnp.bfloat16).at[:H, :].set(w1.T.astype(jnp.bfloat16))
    w2t = jnp.zeros((TP, HP), jnp.bfloat16).at[:T, :H].set(w2.T.astype(jnp.bfloat16))
    b1c = jnp.zeros((HP, 1), jnp.float32).at[:H, 0].set(
        jnp.reshape(b1, (-1,)).astype(jnp.float32))
    b2c = jnp.zeros((TP, 1), jnp.float32).at[:T, 0].set(
        jnp.reshape(b2, (-1,)).astype(jnp.float32))

    # Scoped VMEM: double-buffered z + out tiles plus resident weights.
    z_tile_bytes = TB * D * 4
    out_tile_bytes = TP * TB * 2
    resident_bytes = (HP * D + TP * HP) * 2 + (HP + TP) * 4
    vmem_need = 2 * (z_tile_bytes + out_tile_bytes + resident_bytes) + (2 << 20)
    vmem_limit = int(min(max(vmem_need, 32 << 20), 64 << 20))   # v7x-safe cap

    grid_spec = pltpu.PrefetchScalarGridSpec(
        num_scalar_prefetch=0,
        grid=grid,
        in_specs=[
            pl.BlockSpec((TB, D), lambda i: (i, 0)),     # z batch tile (streamed)
            pl.BlockSpec((HP, D), lambda i: (0, 0)),     # W1^T  (resident)
            pl.BlockSpec((HP, 1), lambda i: (0, 0)),     # b1    (resident)
            pl.BlockSpec((TP, HP), lambda i: (0, 0)),    # W2^T  (resident)
            pl.BlockSpec((TP, 1), lambda i: (0, 0)),     # b2    (resident)
        ],
        out_specs=pl.BlockSpec((TP, TB), lambda i: (0, i)),
    )

    out_t = pl.pallas_call(
        _mlp_kernel,
        out_shape=jax.ShapeDtypeStruct((TP, B_io), jnp.bfloat16),
        grid_spec=grid_spec,
        compiler_params=pltpu.CompilerParams(
            dimension_semantics=("parallel",),            # v7x: shard batch over 2 TCs
            vmem_limit_bytes=vmem_limit),
    )(z_in, w1t, b1c, w2t, b2c)

    if out_transposed:
        # Downstream consumers that accept feature-major (T, B) bf16 logits
        # skip the extra HBM pass of the transpose/upcast below.
        return out_t[:T, :B]
    return out_t[:T, :B].T.astype(jnp.float32)


_PALLAS_MIN_BATCH = 2048   # below this, fused XLA beats kernel launch overhead


def reference_forward(z, w1, b1, w2, b2):
    h = jnp.maximum(z @ w1 + b1, 0.0)
    return h @ w2 + b2


def reference_forward_bf16_matched(z, w1, b1, w2, b2):
    """Mimics the kernel's bf16-operand / f32-accumulate / bf16-output math."""
    f32 = jnp.float32
    zb = z.astype(jnp.bfloat16).astype(f32)
    w1b = w1.astype(jnp.bfloat16).astype(f32)
    w2b = w2.astype(jnp.bfloat16).astype(f32)
    h = jnp.maximum(zb @ w1b + b1.astype(f32), 0.0)
    hb = h.astype(jnp.bfloat16).astype(f32)
    out = hb @ w2b + b2.astype(f32)
    return out.astype(jnp.bfloat16).astype(f32)


def turbine_discriminator(z, w1, b1, w2, b2, *, block_b=None, force_pallas=False,
                          out_transposed=False):
    """Forward pass of TurbineDiscriminator.

    z : (B, latent_dim) float32
    w1: (latent_dim, 64)    b1: (64,)
    w2: (64, num_turbines)  b2: (num_turbines,)
    returns logits: (B, num_turbines) float32 (or (num_turbines, B) bf16 if
    out_transposed=True, avoiding the wrapper-side transpose pass).
    """
    if not force_pallas and z.shape[0] < _PALLAS_MIN_BATCH:
        # Tiny batches: one fused XLA matmul chain beats any pallas_call
        # launch + grid-step overhead.
        out = reference_forward(z, w1, b1, w2, b2)
        return out.T if out_transposed else out
    return _turbine_discriminator_pallas(z, w1, b1, w2, b2, block_b=block_b,
                                         out_transposed=out_transposed)


def init_params(key, latent_dim, num_turbines, hidden=64):
    """Deterministic synthetic init (PyTorch-style uniform fan-in scaling)."""
    k1, k2, k3, k4 = jax.random.split(key, 4)
    lim1 = 1.0 / jnp.sqrt(latent_dim)
    lim2 = 1.0 / jnp.sqrt(hidden)
    w1 = jax.random.uniform(k1, (latent_dim, hidden), jnp.float32, -lim1, lim1)
    b1 = jax.random.uniform(k2, (hidden,), jnp.float32, -lim1, lim1)
    w2 = jax.random.uniform(k3, (hidden, num_turbines), jnp.float32, -lim2, lim2)
    b2 = jax.random.uniform(k4, (num_turbines,), jnp.float32, -lim2, lim2)
    return w1, b1, w2, b2


if __name__ == "__main__":
    key = jax.random.PRNGKey(0)
    k_z, k_z2, k_p = jax.random.split(key, 3)

    latent_dim = 32
    num_turbines = 4
    w1, b1, w2, b2 = init_params(k_p, latent_dim, num_turbines)

    # Main check: batch=384 -> TB=256 -> 2-step grid with a ragged final tile.
    batch = 384
    z = jax.random.normal(k_z, (batch, latent_dim), jnp.float32)
    logits = turbine_discriminator(z, w1, b1, w2, b2, force_pallas=True)
    logits = jax.block_until_ready(logits)
    assert logits.shape == (batch, num_turbines)
    assert logits.dtype == jnp.float32

    ref_bf16 = reference_forward_bf16_matched(z, w1, b1, w2, b2)
    assert jnp.allclose(logits, ref_bf16, atol=1e-2, rtol=1e-2), \
        "mismatch vs bf16-matched reference"
    ref_f32 = reference_forward(z, w1, b1, w2, b2)
    assert jnp.allclose(logits, ref_f32, atol=1e-1, rtol=1e-1), \
        "mismatch vs f32 reference"

    # Ragged-batch check: 200 rows -> TB=128, final tile has only 72 valid rows.
    batch2 = 200
    z2 = jax.random.normal(k_z2, (batch2, latent_dim), jnp.float32)
    logits2 = jax.block_until_ready(
        turbine_discriminator(z2, w1, b1, w2, b2, force_pallas=True))
    assert logits2.shape == (batch2, num_turbines)
    ref2 = reference_forward_bf16_matched(z2, w1, b1, w2, b2)
    assert jnp.allclose(logits2, ref2, atol=1e-2, rtol=1e-2), \
        "ragged-tile mismatch vs bf16-matched reference"

    print("KERNEL_OK")
</pallas_src>

<mosaic_0001>
module attributes {stable_mosaic.version = 11 : i64} {
  func.func @_mlp_kernel(%arg0: i32, %arg1: memref<256x32xf32, #tpu.memory_space<vmem>>, %arg2: memref<128x32xbf16, #tpu.memory_space<vmem>>, %arg3: memref<128x1xf32, #tpu.memory_space<vmem>>, %arg4: memref<8x128xbf16, #tpu.memory_space<vmem>>, %arg5: memref<8x1xf32, #tpu.memory_space<vmem>>, %arg6: memref<8x256xbf16, #tpu.memory_space<vmem>>) attributes {dimension_semantics = [#tpu.dimension_semantics<parallel>], iteration_bounds = array<i64: 2>, scalar_prefetch = 0 : i64, scratch_operands = 0 : i64, tpu.core_type = #tpu.core_type<tc>, window_params = [{transform_indices = @transform_0, window_bounds = array<i64: 256, 32>}, {pipeline_mode = #tpu.pipeline_mode<synchronous>, transform_indices = @transform_1, window_bounds = array<i64: 128, 32>}, {pipeline_mode = #tpu.pipeline_mode<synchronous>, transform_indices = @transform_2, window_bounds = array<i64: 128, 1>}, {pipeline_mode = #tpu.pipeline_mode<synchronous>, transform_indices = @transform_3, window_bounds = array<i64: 8, 128>}, {pipeline_mode = #tpu.pipeline_mode<synchronous>, transform_indices = @transform_4, window_bounds = array<i64: 8, 1>}, {transform_indices = @transform_5, window_bounds = array<i64: 8, 256>}]} {
    %c0 = arith.constant 0 : index
    %c0_0 = arith.constant 0 : index
    %0 = vector.load %arg1[%c0, %c0_0] : memref<256x32xf32, #tpu.memory_space<vmem>>, vector<256x32xf32>
    %1 = arith.truncf %0 : vector<256x32xf32> to vector<256x32xbf16>
    %c0_1 = arith.constant 0 : index
    %c0_2 = arith.constant 0 : index
    %2 = vector.load %arg2[%c0_1, %c0_2] : memref<128x32xbf16, #tpu.memory_space<vmem>>, vector<128x32xbf16>
    %cst = arith.constant dense<0.000000e+00> : vector<128x256xf32>
    %3 = tpu.matmul %2, %1, %cst {dimension_numbers = #tpu.dot_dimension_numbers<[1], [1], [0], [0], [0, 0, 1, 0], [], []>} : vector<128x32xbf16>, vector<256x32xbf16>, vector<128x256xf32> -> vector<128x256xf32>
    %c0_3 = arith.constant 0 : index
    %c0_4 = arith.constant 0 : index
    %4 = vector.load %arg3[%c0_3, %c0_4] : memref<128x1xf32, #tpu.memory_space<vmem>>, vector<128x1xf32>
    %5 = vector.broadcast %4 : vector<128x1xf32> to vector<128x256xf32>
    %6 = arith.addf %3, %5 : vector<128x256xf32>
    %cst_5 = arith.constant 0.000000e+00 : f32
    %7 = vector.broadcast %cst_5 : f32 to vector<128x256xf32>
    %8 = arith.maximumf %6, %7 : vector<128x256xf32>
    %c0_6 = arith.constant 0 : index
    %c0_7 = arith.constant 0 : index
    %9 = vector.load %arg4[%c0_6, %c0_7] : memref<8x128xbf16, #tpu.memory_space<vmem>>, vector<8x128xbf16>
    %10 = arith.truncf %8 : vector<128x256xf32> to vector<128x256xbf16>
    %cst_8 = arith.constant dense<0.000000e+00> : vector<8x256xf32>
    %11 = tpu.matmul %9, %10, %cst_8 {dimension_numbers = #tpu.dot_dimension_numbers<[1], [0], [0], [1], [0, 0, 1, 1], [], []>} : vector<8x128xbf16>, vector<128x256xbf16>, vector<8x256xf32> -> vector<8x256xf32>
    %c0_9 = arith.constant 0 : index
    %c0_10 = arith.constant 0 : index
    %12 = vector.load %arg5[%c0_9, %c0_10] : memref<8x1xf32, #tpu.memory_space<vmem>>, vector<8x1xf32>
    %13 = vector.broadcast %12 : vector<8x1xf32> to vector<8x256xf32>
    %14 = arith.addf %11, %13 : vector<8x256xf32>
    %15 = arith.truncf %14 : vector<8x256xf32> to vector<8x256xbf16>
    %c0_11 = arith.constant 0 : index
    %c0_12 = arith.constant 0 : index
    %16 = vector.load %arg6[%c0_11, %c0_12] : memref<8x256xbf16, #tpu.memory_space<vmem>>, vector<8x256xbf16>
    tpu.vector_store %arg6[%c0_11, %c0_12], %15 {strides = array<i32>} : memref<8x256xbf16, #tpu.memory_space<vmem>>, vector<8x256xbf16>,
    return
  }
  func.func @transform_0(%arg0: i32) -> (i32, i32) {
    %c0_i32 = arith.constant 0 : i32
    %c0_i32_0 = arith.constant 0 : i32
    return %arg0, %c0_i32 : i32, i32
  }
  func.func @transform_1(%arg0: i32) -> (i32, i32) {
    %c0_i32 = arith.constant 0 : i32
    %c0_i32_0 = arith.constant 0 : i32
    %c0_i32_1 = arith.constant 0 : i32
    return %c0_i32, %c0_i32_0 : i32, i32
  }
  func.func @transform_2(%arg0: i32) -> (i32, i32) {
    %c0_i32 = arith.constant 0 : i32
    %c0_i32_0 = arith.constant 0 : i32
    %c0_i32_1 = arith.constant 0 : i32
    return %c0_i32, %c0_i32_0 : i32, i32
  }
  func.func @transform_3(%arg0: i32) -> (i32, i32) {
    %c0_i32 = arith.constant 0 : i32
    %c0_i32_0 = arith.constant 0 : i32
    %c0_i32_1 = arith.constant 0 : i32
    return %c0_i32, %c0_i32_0 : i32, i32
  }
  func.func @transform_4(%arg0: i32) -> (i32, i32) {
    %c0_i32 = arith.constant 0 : i32
    %c0_i32_0 = arith.constant 0 : i32
    %c0_i32_1 = arith.constant 0 : i32
    return %c0_i32, %c0_i32_0 : i32, i32
  }
  func.func @transform_5(%arg0: i32) -> (i32, i32) {
    %c0_i32 = arith.constant 0 : i32
    %c0_i32_0 = arith.constant 0 : i32
    return %c0_i32, %arg0 : i32, i32
  }
}

</mosaic_0001>

<llo_original>
// kernel: tpu_custom_call.1
$region0: #{tpu_custom_call.1}
  #allocation0 [shape = 'u32[]', space=smem, size = 0x4, offset = 0x4, fixed_abs, tag = 'smem constant byte address 0x4 - core index']
  #allocation1 [shape = 'u32[144,128]{1,0:T(1,128)}', space=vmem, size = 0x12000, scoped, tag = 'internal scratch']
  %s0 = inlined_call_operand.vmem [shape: f32[384,32], index: 0, kind: input, shape index: {}]
  %s1 = inlined_call_operand.vmem [shape: bf16[128,32], index: 1, kind: input, shape index: {}]
  %s2 = inlined_call_operand.vmem [shape: f32[128,1], index: 2, kind: input, shape index: {}]
  %s3 = inlined_call_operand.vmem [shape: bf16[8,128], index: 3, kind: input, shape index: {}]
  %s4 = inlined_call_operand.vmem [shape: f32[8,1], index: 4, kind: input, shape index: {}]
  %s5 = inlined_call_operand.hbm [shape: bf16[8,384], index: 5, kind: output, shape index: {}]
  %s6 = sld [smem:[#allocation0]]
  $region53: #{tpu_custom_call.1} parent=0
    _
  %s8 = ssub.s32 1, %s6
  %s9 = scalar_select 0, %s8, %s6
  $region1: #{tpu_custom_call.1} parent=0
    #allocation2 [shape = 'u8[8192]{0}', space=vmem, size = 0x2000, scoped, tag = 'output window, operand 0']
    #allocation3 [shape = 's32[2]{0}', space=sflag, size = 0x8, scoped, tag = 'scoped memory for tpu_custom_call.1']
    %10 = vsyncpa [#allocation3], 0
    %s11 = scalar_lea.sflag [#allocation3], 1
    %12 = vsyncpa %s11, 0
    loop: start=0, step=1, limit=4
    $region2: #{tpu_custom_call.1} parent=1 // loop_pre_header
      _
    $region3: #{tpu_custom_call.1} parent=1 // loop_header
      %s14 = sphi 0, %s18
      %p15 = scmp.ge.s32.totalorder %s14, 4
      %s24 = sphi 0, %s26
      %s27 = sphi 0, %s24
      %s28 = sphi 0, %s27
      %s44 = sphi 0, %s28
      %s48 = sphi 0, %s48
      %s50 = sphi 0, %s48
      %s51 = sphi 0, %s50
      %s65 = sphi 0, %s51
      %s69 = sphi 0, %s69
      %s71 = sphi 0, %s69
      %s72 = sphi 0, %s71
      %s86 = sphi 0, %s72
      %s90 = sphi 0, %s90
      %s92 = sphi 0, %s90
      %s93 = sphi 0, %s92
      %s107 = sphi 0, %s93
      %s111 = sphi 0, %s111
      %s113 = sphi 0, %s111
      %s114 = sphi 0, %s113
      %s128 = sphi 0, %s114
      %s134 = sphi 0, %s136
      %s137 = sphi 0, %s134
      %s138 = sphi 0, %s137
      %s154 = sphi 0, %s138
    $region4: #{tpu_custom_call.1} parent=1 // loop_header_branch
      %17 = sbr.rel (%p15) target = $region8
    $region5: #{tpu_custom_call.1} parent=1 // loop_body
      %s19 = ssub.s32 %s14, 1
      %s20 = ssub.s32 %s14, 2
      %s21 = sadd.s32 %s14, 1
      %s22 = ssub.s32 %s14, %s21
      %p23 = scmp.eq.s32.totalorder %s22, 0
      %s25 = sadd.s32 %s24, 1
      %s26 = scalar_select %p23, %s24, %s25
      %p29 = pneg %p23
      %p30 = scmp.eq.s32.totalorder %s14, 1
      %p31 = por %p29, %p30
      %p32 = scmp.ne.s32.totalorder %s24, %s27
      %p33 = scmp.eq.s32.totalorder %s14, 0
      %p34 = por %p32, %p33
      %p35 = scmp.ne.s32.totalorder %s24, %s27
      %p36 = scmp.eq.s32.totalorder %s19, 1
      %p37 = por %p35, %p36
      %p38 = scmp.ne.s32.totalorder %s27, %s28
      %p39 = scmp.eq.s32.totalorder %s19, 0
      %p40 = por %p38, %p39
      %p41 = scmp.ne.s32.totalorder %s27, %s28
      %p42 = scmp.eq.s32.totalorder %s20, 1
      %p43 = por %p41, %p42
      %p45 = scmp.ne.s32.totalorder %s28, %s44
      %p46 = scmp.eq.s32.totalorder %s20, 0
      %p47 = por %p45, %p46
      %s49 = sadd.s32 %s48, 1
      %p52 = scmp.eq.s32.totalorder %s14, 1
      %p53 = scmp.ne.s32.totalorder %s48, %s50
      %p54 = scmp.eq.s32.totalorder %s14, 0
      %p55 = por %p53, %p54
      %p56 = scmp.ne.s32.totalorder %s48, %s50
      %p57 = scmp.eq.s32.totalorder %s19, 1
      %p58 = por %p56, %p57
      %p59 = scmp.ne.s32.totalorder %s50, %s51
      %p60 = scmp.eq.s32.totalorder %s19, 0
      %p61 = por %p59, %p60
      %p62 = scmp.ne.s32.totalorder %s50, %s51
      %p63 = scmp.eq.s32.totalorder %s20, 1
      %p64 = por %p62, %p63
      %p66 = scmp.ne.s32.totalorder %s51, %s65
      %p67 = scmp.eq.s32.totalorder %s20, 0
      %p68 = por %p66, %p67
      %s70 = sadd.s32 %s69, 1
      %p73 = scmp.eq.s32.totalorder %s14, 1
      %p74 = scmp.ne.s32.totalorder %s69, %s71
      %p75 = scmp.eq.s32.totalorder %s14, 0
      %p76 = por %p74, %p75
      %p77 = scmp.ne.s32.totalorder %s69, %s71
      %p78 = scmp.eq.s32.totalorder %s19, 1
      %p79 = por %p77, %p78
      %p80 = scmp.ne.s32.totalorder %s71, %s72
      %p81 = scmp.eq.s32.totalorder %s19, 0
      %p82 = por %p80, %p81
      %p83 = scmp.ne.s32.totalorder %s71, %s72
      %p84 = scmp.eq.s32.totalorder %s20, 1
      %p85 = por %p83, %p84
      %p87 = scmp.ne.s32.totalorder %s72, %s86
      %p88 = scmp.eq.s32.totalorder %s20, 0
      %p89 = por %p87, %p88
      %s91 = sadd.s32 %s90, 1
      %p94 = scmp.eq.s32.totalorder %s14, 1
      %p95 = scmp.ne.s32.totalorder %s90, %s92
      %p96 = scmp.eq.s32.totalorder %s14, 0
      %p97 = por %p95, %p96
      %p98 = scmp.ne.s32.totalorder %s90, %s92
      %p99 = scmp.eq.s32.totalorder %s19, 1
      %p100 = por %p98, %p99
      %p101 = scmp.ne.s32.totalorder %s92, %s93
      %p102 = scmp.eq.s32.totalorder %s19, 0
      %p103 = por %p101, %p102
      %p104 = scmp.ne.s32.totalorder %s92, %s93
      %p105 = scmp.eq.s32.totalorder %s20, 1
      %p106 = por %p104, %p105
      %p108 = scmp.ne.s32.totalorder %s93, %s107
      %p109 = scmp.eq.s32.totalorder %s20, 0
      %p110 = por %p108, %p109
      %s112 = sadd.s32 %s111, 1
      %p115 = scmp.eq.s32.totalorder %s14, 1
      %p116 = scmp.ne.s32.totalorder %s111, %s113
      %p117 = scmp.eq.s32.totalorder %s14, 0
      %p118 = por %p116, %p117
      %p119 = scmp.ne.s32.totalorder %s111, %s113
      %p120 = scmp.eq.s32.totalorder %s19, 1
      %p121 = por %p119, %p120
      %p122 = scmp.ne.s32.totalorder %s113, %s114
      %p123 = scmp.eq.s32.totalorder %s19, 0
      %p124 = por %p122, %p123
      %p125 = scmp.ne.s32.totalorder %s113, %s114
      %p126 = scmp.eq.s32.totalorder %s20, 1
      %p127 = por %p125, %p126
      %p129 = scmp.ne.s32.totalorder %s114, %s128
      %p130 = scmp.eq.s32.totalorder %s20, 0
      %p131 = por %p129, %p130
      %s132 = ssub.s32 %s14, %s21
      %p133 = scmp.eq.s32.totalorder %s132, 0
      %s135 = sadd.s32 %s134, 1
      %s136 = scalar_select %p133, %s134, %s135
      %p139 = pneg %p133
      %p140 = scmp.eq.s32.totalorder %s14, 1
      %p141 = por %p139, %p140
      %p142 = scmp.ne.s32.totalorder %s134, %s137
      %p143 = scmp.eq.s32.totalorder %s14, 0
      %p144 = por %p142, %p143
      %p145 = scmp.ne.s32.totalorder %s134, %s137
      %p146 = scmp.eq.s32.totalorder %s19, 1
      %p147 = por %p145, %p146
      %p148 = scmp.ne.s32.totalorder %s137, %s138
      %p149 = scmp.eq.s32.totalorder %s19, 0
      %p150 = por %p148, %p149
      %p151 = scmp.ne.s32.totalorder %s137, %s138
      %p152 = scmp.eq.s32.totalorder %s20, 1
      %p153 = por %p151, %p152
      %p155 = scmp.ne.s32.totalorder %s138, %s154
      %p156 = scmp.eq.s32.totalorder %s20, 0
      %p157 = por %p155, %p156
      %p158 = scmp.le.s32.totalorder 1, %s14
      %p159 = scmp.lt.s32.totalorder %s14, 3
      %p160 = pnand %p158, %p159
      %p161 = pneg %p160
      // Predicated region
      $region9: #{tpu_custom_call.1} parent=5 // pred_check
        _
      $region10: #{tpu_custom_call.1} parent=5 // pred_check_branch
        %163 = sbr.rel (%p160) target = $region12
      $region11: #{tpu_custom_call.1} parent=5 // pred_region
        %s164 = ssub.s32 %s14, 1
        // Predicated region
        $region13: #{tpu_custom_call.1} parent=11 // pred_check
          %p165 = pneg %p61
        $region14: #{tpu_custom_call.1} parent=11 // pred_check_branch
          %167 = sbr.rel (%p165) target = $region16
        $region15: #{tpu_custom_call.1} parent=11 // pred_region
          _
        $region16: #{tpu_custom_call.1} parent=11 // pred_fallthru
          _
        // Predicated region
        $region17: #{tpu_custom_call.1} parent=11 // pred_check
          %p168 = pneg %p82
        $region18: #{tpu_custom_call.1} parent=11 // pred_check_branch
          %170 = sbr.rel (%p168) target = $region20
        $region19: #{tpu_custom_call.1} parent=11 // pred_region
          _
        $region20: #{tpu_custom_call.1} parent=11 // pred_fallthru
          _
        // Predicated region
        $region21: #{tpu_custom_call.1} parent=11 // pred_check
          %p171 = pneg %p103
        $region22: #{tpu_custom_call.1} parent=11 // pred_check_branch
          %173 = sbr.rel (%p171) target = $region24
        $region23: #{tpu_custom_call.1} parent=11 // pred_region
          _
        $region24: #{tpu_custom_call.1} parent=11 // pred_fallthru
          _
        // Predicated region
        $region25: #{tpu_custom_call.1} parent=11 // pred_check
          %p174 = pneg %p124
        $region26: #{tpu_custom_call.1} parent=11 // pred_check_branch
          %176 = sbr.rel (%p174) target = $region28
        $region27: #{tpu_custom_call.1} parent=11 // pred_region
          _
        $region28: #{tpu_custom_call.1} parent=11 // pred_fallthru
          _
      $region12: #{tpu_custom_call.1} parent=5 // pred_fallthru
        _
      %p177 = scmp.lt.s32.totalorder %s14, 2
      // Predicated region
      $region29: #{tpu_custom_call.1} parent=5 // pred_check
        %p178 = pneg %p177
      $region30: #{tpu_custom_call.1} parent=5 // pred_check_branch
        %180 = sbr.rel (%p178) target = $region32
      $region31: #{tpu_custom_call.1} parent=5 // pred_region
        // Predicated region
        $region33: #{tpu_custom_call.1} parent=31 // pred_check
          %p181 = pneg %p34
        $region34: #{tpu_custom_call.1} parent=31 // pred_check_branch
          %183 = sbr.rel (%p181) target = $region36
        $region35: #{tpu_custom_call.1} parent=31 // pred_region
          %s184 = smul.u32 32, %s14
          %s185 = ssub.s32 48, %s184
          %p186 = scmp.lt.s32.totalorder %s185, 32
          %s187 = scalar_select %p186, %s185, 32
          %s188 = smul.u32 128, %s187
          %p189 = scmp.lt.s32.totalorder %s184, 47
          %s190 = scalar_select %p189, %s184, 47
          %s191 = smul.addr %s190, 8
          %s192 = scalar_lea.vmem %s0, %s191
          %s193 = smul.u32 32, %s14
          %s194 = ssub.s32 48, %s193
          %p195 = scmp.lt.s32.totalorder %s194, 32
          %s196 = scalar_select %p195, %s194, 32
          %s197 = smul.u32 128, %s196
        $region36: #{tpu_custom_call.1} parent=31 // pred_fallthru
          _
      $region32: #{tpu_custom_call.1} parent=5 // pred_fallthru
        _
      %p198 = scmp.le.s32.totalorder 1, %s14
      %p199 = scmp.lt.s32.totalorder %s14, 3
      %p200 = pnand %p198, %p199
      %p201 = pneg %p200
      // Predicated region
      $region37: #{tpu_custom_call.1} parent=5 // pred_check
        _
      $region38: #{tpu_custom_call.1} parent=5 // pred_check_branch
        %203 = sbr.rel (%p200) target = $region40
      $region39: #{tpu_custom_call.1} parent=5 // pred_region
        %s204 = ssub.s32 %s14, 1
        %s205 = smul.u32 32, %s19
        %s206 = ssub.s32 48, %s205
        %p207 = scmp.lt.s32.totalorder %s206, 32
        %s208 = scalar_select %p207, %s206, 32
        %s209 = smul.u32 128, %s208
        %p210 = scmp.lt.s32.totalorder %s205, 47
        %s211 = scalar_select %p210, %s205, 47
        %s212 = smul.addr %s211, 8
        %s213 = scalar_lea.vmem %s0, %s212
        %p214 = pneg %p40
        %p215 = pneg %p37
        %p216 = pneg %p61
        %p217 = pneg %p58
        %p218 = pneg %p82
        %p219 = pneg %p79
        %p220 = pneg %p103
        %p221 = pneg %p100
        %p222 = pneg %p124
        %p223 = pneg %p121
        %p224 = pneg %p150
        %p225 = pneg %p147
        %s226 = sand.u32 %s137, 1
        %s227 = scalar_lea.sflag [#allocation3], %s226
        %s228 = sand.u32 %s137, 1
        %s229 = smul.addr %s228, 8
        %s230 = scalar_lea.vmem [#allocation2], %s229
        %s231 = smul.u32 32, %s19
        %s232 = ssub.s32 48, %s231
        %p233 = scmp.lt.s32.totalorder %s232, 32
        %s234 = scalar_select %p233, %s232, 32
        %s235 = smul.u32 128, %s234
        %p236 = scmp.lt.s32.totalorder %s231, 47
        %s237 = scalar_select %p236, %s231, 47
        %s238 = smul.addr %s237, 8
        %s239 = scalar_lea.vmem %s0, %s238
        %s240 = smul.u32 32, %s19
        %s241 = ssub.s32 48, %s240
        %p242 = scmp.lt.s32.totalorder %s241, 32
        %s243 = scalar_select %p242, %s241, 32
        %s244 = smul.u32 128, %s243
        %s245 = smul.u32 2, %s19
        %s246 = ssub.s32 3, %s245
        %p247 = scmp.lt.s32.totalorder %s246, 2
        %s248 = scalar_select %p247, %s246, 2
        %s249 = smul.u32 64, %s248
        %v251 = vld [vmem:[%s239] sm:$0xff]
        %v252 = vld [vmem:[%s239 + $0x8] sm:$0xff]
        %v253 = vld [vmem:[%s239 + $0x10] sm:$0xff]
        %v254 = vld [vmem:[%s239 + $0x18] sm:$0xff]
        %v255 = vld [vmem:[%s239 + $0x20] sm:$0xff]
        %v256 = vld [vmem:[%s239 + $0x28] sm:$0xff]
        %v257 = vld [vmem:[%s239 + $0x30] sm:$0xff]
        %v258 = vld [vmem:[%s239 + $0x38] sm:$0xff]
        %v259 = vld [vmem:[%s239 + $0x40] sm:$0xff]
        %v260 = vld [vmem:[%s239 + $0x48] sm:$0xff]
        %v261 = vld [vmem:[%s239 + $0x50] sm:$0xff]
        %v262 = vld [vmem:[%s239 + $0x58] sm:$0xff]
        %v263 = vld [vmem:[%s239 + $0x60] sm:$0xff]
        %v264 = vld [vmem:[%s239 + $0x68] sm:$0xff]
        %v265 = vld [vmem:[%s239 + $0x70] sm:$0xff]
        %v266 = vld [vmem:[%s239 + $0x78] sm:$0xff]
        %v267 = vld [vmem:[%s239 + $0x80] sm:$0xff]
        %v268 = vld [vmem:[%s239 + $0x88] sm:$0xff]
        %v269 = vld [vmem:[%s239 + $0x90] sm:$0xff]
        %v270 = vld [vmem:[%s239 + $0x98] sm:$0xff]
        %v271 = vld [vmem:[%s239 + $0xa0] sm:$0xff]
        %v272 = vld [vmem:[%s239 + $0xa8] sm:$0xff]
        %v273 = vld [vmem:[%s239 + $0xb0] sm:$0xff]
        %v274 = vld [vmem:[%s239 + $0xb8] sm:$0xff]
        %v275 = vld [vmem:[%s239 + $0xc0] sm:$0xff]
        %v276 = vld [vmem:[%s239 + $0xc8] sm:$0xff]
        %v277 = vld [vmem:[%s239 + $0xd0] sm:$0xff]
        %v278 = vld [vmem:[%s239 + $0xd8] sm:$0xff]
        %v279 = vld [vmem:[%s239 + $0xe0] sm:$0xff]
        %v280 = vld [vmem:[%s239 + $0xe8] sm:$0xff]
        %v281 = vld [vmem:[%s239 + $0xf0] sm:$0xff]
        %v282 = vld [vmem:[%s239 + $0xf8] sm:$0xff]
        %v283 = vpack.c.bf16 %v252, %v251
        %v284 = vpack.c.bf16 %v254, %v253
        %v285 = vpack.c.bf16 %v256, %v255
        %v286 = vpack.c.bf16 %v258, %v257
        %v287 = vpack.c.bf16 %v260, %v259
        %v288 = vpack.c.bf16 %v262, %v261
        %v289 = vpack.c.bf16 %v264, %v263
        %v290 = vpack.c.bf16 %v266, %v265
        %v291 = vpack.c.bf16 %v268, %v267
        %v292 = vpack.c.bf16 %v270, %v269
        %v293 = vpack.c.bf16 %v272, %v271
        %v294 = vpack.c.bf16 %v274, %v273
        %v295 = vpack.c.bf16 %v276, %v275
        %v296 = vpack.c.bf16 %v278, %v277
        %v297 = vpack.c.bf16 %v280, %v279
        %v298 = vpack.c.bf16 %v282, %v281
        %v299 = vld [vmem:[%s1] sm:$0xf]
        %v300 = vld [vmem:[%s1 + $0x4] sm:$0xf]
        %v301 = vld [vmem:[%s1 + $0x8] sm:$0xf]
        %v302 = vld [vmem:[%s1 + $0xc] sm:$0xf]
        %v303 = vld [vmem:[%s1 + $0x10] sm:$0xf]
        %v304 = vld [vmem:[%s1 + $0x14] sm:$0xf]
        %v305 = vld [vmem:[%s1 + $0x18] sm:$0xf]
        %v306 = vld [vmem:[%s1 + $0x1c] sm:$0xf]
        %v307 = vld [vmem:[%s1 + $0x20] sm:$0xf]
        %v308 = vld [vmem:[%s1 + $0x24] sm:$0xf]
        %v309 = vld [vmem:[%s1 + $0x28] sm:$0xf]
        %v310 = vld [vmem:[%s1 + $0x2c] sm:$0xf]
        %v311 = vld [vmem:[%s1 + $0x30] sm:$0xf]
        %v312 = vld [vmem:[%s1 + $0x34] sm:$0xf]
        %v313 = vld [vmem:[%s1 + $0x38] sm:$0xf]
        %v314 = vld [vmem:[%s1 + $0x3c] sm:$0xf]
        %v315 = vld [vmem:[%s2] sm:$0xff]
        %v316 = vld [vmem:[%s2 + $0x8] sm:$0xff]
        %v317 = vld [vmem:[%s2 + $0x10] sm:$0xff]
        %v318 = vld [vmem:[%s2 + $0x18] sm:$0xff]
        %v319 = vld [vmem:[%s2 + $0x20] sm:$0xff]
        %v320 = vld [vmem:[%s2 + $0x28] sm:$0xff]
        %v321 = vld [vmem:[%s2 + $0x30] sm:$0xff]
        %v322 = vld [vmem:[%s2 + $0x38] sm:$0xff]
        %v323 = vld [vmem:[%s2 + $0x40] sm:$0xff]
        %v324 = vld [vmem:[%s2 + $0x48] sm:$0xff]
        %v325 = vld [vmem:[%s2 + $0x50] sm:$0xff]
        %v326 = vld [vmem:[%s2 + $0x58] sm:$0xff]
        %v327 = vld [vmem:[%s2 + $0x60] sm:$0xff]
        %v328 = vld [vmem:[%s2 + $0x68] sm:$0xff]
        %v329 = vld [vmem:[%s2 + $0x70] sm:$0xff]
        %v330 = vld [vmem:[%s2 + $0x78] sm:$0xff]
        %332 = vset.pattern.permute.xlu0 0
        %333 = vperm.xlu0 %332, %v315
        %v334 = vpop.permute.xlu0 %333
        %337 = vset.pattern.permute.xlu0 0
        %338 = vperm.xlu0 %337, %v316
        %v339 = vpop.permute.xlu0 %338
        %342 = vset.pattern.permute.xlu0 0
        %343 = vperm.xlu0 %342, %v317
        %v344 = vpop.permute.xlu0 %343
        %347 = vset.pattern.permute.xlu0 0
        %348 = vperm.xlu0 %347, %v318
        %v349 = vpop.permute.xlu0 %348
        %352 = vset.pattern.permute.xlu0 0
        %353 = vperm.xlu0 %352, %v319
        %v354 = vpop.permute.xlu0 %353
        %357 = vset.pattern.permute.xlu0 0
        %358 = vperm.xlu0 %357, %v320
        %v359 = vpop.permute.xlu0 %358
        %362 = vset.pattern.permute.xlu0 0
        %363 = vperm.xlu0 %362, %v321
        %v364 = vpop.permute.xlu0 %363
        %367 = vset.pattern.permute.xlu0 0
        %368 = vperm.xlu0 %367, %v322
        %v369 = vpop.permute.xlu0 %368
        %372 = vset.pattern.permute.xlu0 0
        %373 = vperm.xlu0 %372, %v323
        %v374 = vpop.permute.xlu0 %373
        %377 = vset.pattern.permute.xlu0 0
        %378 = vperm.xlu0 %377, %v324
        %v379 = vpop.permute.xlu0 %378
        %382 = vset.pattern.permute.xlu0 0
        %383 = vperm.xlu0 %382, %v325
        %v384 = vpop.permute.xlu0 %383
        %387 = vset.pattern.permute.xlu0 0
        %388 = vperm.xlu0 %387, %v326
        %v389 = vpop.permute.xlu0 %388
        %392 = vset.pattern.permute.xlu0 0
        %393 = vperm.xlu0 %392, %v327
        %v394 = vpop.permute.xlu0 %393
        %397 = vset.pattern.permute.xlu0 0
        %398 = vperm.xlu0 %397, %v328
        %v399 = vpop.permute.xlu0 %398
        %402 = vset.pattern.permute.xlu0 0
        %403 = vperm.xlu0 %402, %v329
        %v404 = vpop.permute.xlu0 %403
        %407 = vset.pattern.permute.xlu0 0
        %408 = vperm.xlu0 %407, %v330
        %v409 = vpop.permute.xlu0 %408
        %v427 = vunpack.c.l.b16 %v299
        %v428 = vunpack.c.l.b16 %v300
        %v429 = vunpack.c.l.b16 %v301
        %v430 = vunpack.c.l.b16 %v302
        %v431 = vunpack.c.l.b16 %v303
        %v432 = vunpack.c.l.b16 %v304
        %v433 = vunpack.c.l.b16 %v305
        %v434 = vunpack.c.l.b16 %v306
        %v435 = vunpack.c.l.b16 %v307
        %v436 = vunpack.c.l.b16 %v308
        %v437 = vunpack.c.l.b16 %v309
        %v438 = vunpack.c.l.b16 %v310
        %v439 = vunpack.c.l.b16 %v311
        %v440 = vunpack.c.l.b16 %v312
        %v441 = vunpack.c.l.b16 %v313
        %v442 = vunpack.c.l.b16 %v314
        %v443 = vpack.c.b16 %v428, %v427
        %v444 = vpack.c.b16 %v430, %v429
        %v445 = vpack.c.b16 %v432, %v431
        %v446 = vpack.c.b16 %v434, %v433
        %v447 = vpack.c.b16 %v436, %v435
        %v448 = vpack.c.b16 %v438, %v437
        %v449 = vpack.c.b16 %v440, %v439
        %v450 = vpack.c.b16 %v442, %v441
        %vm451 = vcmask 261120
        %v453 = vsel %vm451, %v443, 0
        %v456 = vsel %vm451, %v444, 0
        %v459 = vsel %vm451, %v445, 0
        %v462 = vsel %vm451, %v446, 0
        %v465 = vsel %vm451, %v447, 0
        %v468 = vsel %vm451, %v448, 0
        %v471 = vsel %vm451, %v449, 0
        %v474 = vsel %vm451, %v450, 0
        %v477 = vsel %vm451, %v283, 0
        %v480 = vsel %vm451, %v284, 0
        %v483 = vsel %vm451, %v285, 0
        %v486 = vsel %vm451, %v286, 0
        %v489 = vsel %vm451, %v287, 0
        %v492 = vsel %vm451, %v288, 0
        %v495 = vsel %vm451, %v289, 0
        %v498 = vsel %vm451, %v290, 0
        %v501 = vsel %vm451, %v291, 0
        %v504 = vsel %vm451, %v292, 0
        %v507 = vsel %vm451, %v293, 0
        %v510 = vsel %vm451, %v294, 0
        %v513 = vsel %vm451, %v295, 0
        %v516 = vsel %vm451, %v296, 0
        %v519 = vsel %vm451, %v297, 0
        %v522 = vsel %vm451, %v298, 0
        %524 = vmatprep.subr.bf16.mxu0 0
        %525 = vmatpush1.bf16.xpose.msra.mxu0 %v498
        %526 = vmatprep.subr.bf16.mxu0 0
        %527 = vmatpush1.bf16.xpose.msra.mxu0 %v495
        %528 = vmatprep.subr.bf16.mxu0 0
        %529 = vmatpush1.bf16.xpose.msra.mxu0 %v492
        %530 = vmatprep.subr.bf16.mxu0 0
        %531 = vmatpush1.bf16.xpose.msra.mxu0 %v489
        %532 = vmatprep.subr.bf16.mxu0 0
        %533 = vmatpush1.bf16.xpose.msra.mxu0 %v486
        %534 = vmatprep.subr.bf16.mxu0 0
        %535 = vmatpush1.bf16.xpose.msra.mxu0 %v483
        %536 = vmatprep.subr.bf16.mxu0 0
        %537 = vmatpush1.bf16.xpose.msra.mxu0 %v480
        %538 = vmatprep.subr.bf16.mxu0 0
        %539 = vmatpush1.bf16.xpose.msra.mxu0 %v477
        %540 = vmatprep.subr.bf16.mxu0 0
        %541 = vmatpush2.bf16.xpose.msra.mxu0 %v522
        %542 = vmatprep.subr.bf16.mxu0 0
        %543 = vmatpush2.bf16.xpose.msra.mxu0 %v519
        %544 = vmatprep.subr.bf16.mxu0 0
        %545 = vmatpush2.bf16.xpose.msra.mxu0 %v516
        %546 = vmatprep.subr.bf16.mxu0 0
        %547 = vmatpush2.bf16.xpose.msra.mxu0 %v513
        %548 = vmatprep.subr.bf16.mxu0 0
        %549 = vmatpush2.bf16.xpose.msra.mxu0 %v510
        %550 = vmatprep.subr.bf16.mxu0 0
        %551 = vmatpush2.bf16.xpose.msra.mxu0 %v507
        %552 = vmatprep.subr.bf16.mxu0 0
        %553 = vmatpush2.bf16.xpose.msra.mxu0 %v504
        %554 = vmatprep.subr.bf16.mxu0 0
        %555 = vmatpush2.bf16.xpose.msra.mxu0 %v501
        %556 = vmatprep.mubr.bf16.mxu0 0
        %557 = vmatmul.mubr.bf16.gmra.mxu0 %v453
        %v558 = vpop.f32.mrf.mxu0
        %v559 = vadd.f32 %v334, %v558
        %v560 = vpop.f32.mrf.mxu0
        %v561 = vadd.f32 %v334, %v560
        %v562 = vpop.f32.mrf.mxu0
        %v563 = vadd.f32 %v339, %v562
        %v564 = vpop.f32.mrf.mxu0
        %v565 = vadd.f32 %v339, %v564
        %566 = vmatprep.mubr.bf16.mxu0 0
        %567 = vmatmul.mubr.bf16.gmra.mxu0 %v456
        %v568 = vpop.f32.mrf.mxu0
        %v569 = vadd.f32 %v344, %v568
        %v570 = vpop.f32.mrf.mxu0
        %v571 = vadd.f32 %v344, %v570
        %v572 = vpop.f32.mrf.mxu0
        %v573 = vadd.f32 %v349, %v572
        %v574 = vpop.f32.mrf.mxu0
        %v575 = vadd.f32 %v349, %v574
        %576 = vmatprep.mubr.bf16.mxu0 0
        %577 = vmatmul.mubr.bf16.gmra.mxu0 %v459
        %v578 = vpop.f32.mrf.mxu0
        %v579 = vadd.f32 %v354, %v578
        %v580 = vpop.f32.mrf.mxu0
        %v581 = vadd.f32 %v354, %v580
        %v582 = vpop.f32.mrf.mxu0
        %v583 = vadd.f32 %v359, %v582
        %v584 = vpop.f32.mrf.mxu0
        %v585 = vadd.f32 %v359, %v584
        %586 = vmatprep.mubr.bf16.mxu0 0
        %587 = vmatmul.mubr.bf16.gmra.mxu0 %v462
        %v588 = vpop.f32.mrf.mxu0
        %v589 = vadd.f32 %v364, %v588
        %v590 = vpop.f32.mrf.mxu0
        %v591 = vadd.f32 %v364, %v590
        %v592 = vpop.f32.mrf.mxu0
        %v593 = vadd.f32 %v369, %v592
        %v594 = vpop.f32.mrf.mxu0
        %v595 = vadd.f32 %v369, %v594
        %596 = vmatprep.mubr.bf16.mxu0 0
        %597 = vmatmul.mubr.bf16.gmra.mxu0 %v465
        %v598 = vpop.f32.mrf.mxu0
        %v599 = vadd.f32 %v374, %v598
        %v600 = vpop.f32.mrf.mxu0
        %v601 = vadd.f32 %v374, %v600
        %v602 = vpop.f32.mrf.mxu0
        %v603 = vadd.f32 %v379, %v602
        %v604 = vpop.f32.mrf.mxu0
        %v605 = vadd.f32 %v379, %v604
        %606 = vmatprep.mubr.bf16.mxu0 0
        %607 = vmatmul.mubr.bf16.gmra.mxu0 %v468
        %v608 = vpop.f32.mrf.mxu0
        %v609 = vadd.f32 %v384, %v608
        %v610 = vpop.f32.mrf.mxu0
        %v611 = vadd.f32 %v384, %v610
        %v612 = vpop.f32.mrf.mxu0
        %v613 = vadd.f32 %v389, %v612
        %v614 = vpop.f32.mrf.mxu0
        %v615 = vadd.f32 %v389, %v614
        %616 = vmatprep.mubr.bf16.mxu0 0
        %617 = vmatmul.mubr.bf16.gmra.mxu0 %v471
        %v618 = vpop.f32.mrf.mxu0
        %v619 = vadd.f32 %v394, %v618
        %v620 = vpop.f32.mrf.mxu0
        %v621 = vadd.f32 %v394, %v620
        %v622 = vpop.f32.mrf.mxu0
        %v623 = vadd.f32 %v399, %v622
        %v624 = vpop.f32.mrf.mxu0
        %v625 = vadd.f32 %v399, %v624
        %626 = vmatprep.mubr.bf16.mxu0 0
        %627 = vmatmul.mubr.bf16.gmra.mxu0 %v474
        %v628 = vpop.f32.mrf.mxu0
        %v629 = vadd.f32 %v404, %v628
        %v630 = vpop.f32.mrf.mxu0
        %v631 = vadd.f32 %v404, %v630
        %v632 = vpop.f32.mrf.mxu0
        %v633 = vadd.f32 %v409, %v632
        %v634 = vpop.f32.mrf.mxu0
        %v635 = vadd.f32 %v409, %v634
        %636 = vdwg.mxu0
        %v637 = vmax.f32 %v559, 0.0
        %v638 = vmax.f32 %v561, 0.0
        %v639 = vmax.f32 %v563, 0.0
        %v640 = vmax.f32 %v565, 0.0
        %v641 = vmax.f32 %v569, 0.0
        %v642 = vmax.f32 %v571, 0.0
        %v643 = vmax.f32 %v573, 0.0
        %v644 = vmax.f32 %v575, 0.0
        %v645 = vmax.f32 %v579, 0.0
        %v646 = vmax.f32 %v581, 0.0
        %v647 = vmax.f32 %v583, 0.0
        %v648 = vmax.f32 %v585, 0.0
        %v649 = vmax.f32 %v589, 0.0
        %v650 = vmax.f32 %v591, 0.0
        %v651 = vmax.f32 %v593, 0.0
        %v652 = vmax.f32 %v595, 0.0
        %v653 = vmax.f32 %v599, 0.0
        %v654 = vmax.f32 %v601, 0.0
        %v655 = vmax.f32 %v603, 0.0
        %v656 = vmax.f32 %v605, 0.0
        %v657 = vmax.f32 %v609, 0.0
        %v658 = vmax.f32 %v611, 0.0
        %v659 = vmax.f32 %v613, 0.0
        %v660 = vmax.f32 %v615, 0.0
        %v661 = vmax.f32 %v619, 0.0
        %v662 = vmax.f32 %v621, 0.0
        %v663 = vmax.f32 %v623, 0.0
        %v664 = vmax.f32 %v625, 0.0
        %v665 = vmax.f32 %v629, 0.0
        %v666 = vmax.f32 %v631, 0.0
        %v667 = vmax.f32 %v633, 0.0
        %v668 = vmax.f32 %v635, 0.0
        %v669 = vld [vmem:[%s3] sm:$0xf]
        %v670 = vpack.c.bf16 %v639, %v637
        %v671 = vpack.c.bf16 %v640, %v638
        %v672 = vpack.c.bf16 %v643, %v641
        %v673 = vpack.c.bf16 %v644, %v642
        %v674 = vpack.c.bf16 %v647, %v645
        %v675 = vpack.c.bf16 %v648, %v646
        %v676 = vpack.c.bf16 %v651, %v649
        %v677 = vpack.c.bf16 %v652, %v650
        %v678 = vpack.c.bf16 %v655, %v653
        %v679 = vpack.c.bf16 %v656, %v654
        %v680 = vpack.c.bf16 %v659, %v657
        %v681 = vpack.c.bf16 %v660, %v658
        %v682 = vpack.c.bf16 %v663, %v661
        %v683 = vpack.c.bf16 %v664, %v662
        %v684 = vpack.c.bf16 %v667, %v665
        %v685 = vpack.c.bf16 %v668, %v666
        %v686 = vld [vmem:[%s4] sm:$0xff]
        %688 = vset.pattern.permute.xlu0 0
        %689 = vperm.xlu0 %688, %v686
        %v690 = vpop.permute.xlu0 %689
        %692 = vmatprep.subr.bf16.mxu0 %v685
        %693 = vmatpush1.bf16.msra.mxu0 %v684
        %694 = vmatprep.subr.bf16.mxu0 %v683
        %695 = vmatpush1.bf16.msra.mxu0 %v682
        %696 = vmatprep.subr.bf16.mxu0 %v681
        %697 = vmatpush1.bf16.msra.mxu0 %v680
        %698 = vmatprep.subr.bf16.mxu0 %v679
        %699 = vmatpush1.bf16.msra.mxu0 %v678
        %700 = vmatprep.subr.bf16.mxu0 %v677
        %701 = vmatpush1.bf16.msra.mxu0 %v676
        %702 = vmatprep.subr.bf16.mxu0 %v675
        %703 = vmatpush1.bf16.msra.mxu0 %v674
        %704 = vmatprep.subr.bf16.mxu0 %v673
        %705 = vmatpush1.bf16.msra.mxu0 %v672
        %706 = vmatprep.subr.bf16.mxu0 %v671
        %707 = vmatpush1.bf16.msra.mxu0 %v670
        %708 = vmatprep.subr.bf16.mxu0 0
        %709 = vmatpush2.bf16.msra.mxu0 0
        %710 = vmatprep.subr.bf16.mxu0 0
        %711 = vmatpush2.bf16.msra.mxu0 0
        %712 = vmatprep.subr.bf16.mxu0 0
        %713 = vmatpush2.bf16.msra.mxu0 0
        %714 = vmatprep.subr.bf16.mxu0 0
        %715 = vmatpush2.bf16.msra.mxu0 0
        %716 = vmatprep.subr.bf16.mxu0 0
        %717 = vmatpush2.bf16.msra.mxu0 0
        %718 = vmatprep.subr.bf16.mxu0 0
        %719 = vmatpush2.bf16.msra.mxu0 0
        %720 = vmatprep.subr.bf16.mxu0 0
        %721 = vmatpush2.bf16.msra.mxu0 0
        %722 = vmatprep.subr.bf16.mxu0 0
        %723 = vmatpush2.bf16.msra.mxu0 0
        %724 = vmatprep.mubr.bf16.mxu0 0
        %725 = vmatmul.mubr.bf16.gmra.mxu0 %v669
        %v726 = vpop.f32.mrf.mxu0
        %v727 = vadd.f32 %v690, %v726
        %v728 = vpop.f32.mrf.mxu0
        %v729 = vadd.f32 %v690, %v728
        %v730 = vpop.f32.mrf.mxu0
        %v731 = vpop.f32.mrf.mxu0
        %732 = vdwg.mxu0
        %v733 = vpack.c.bf16 %v727, %v727
        %v734 = vpack.c.bf16 %v729, %v729
        %v737 = vunpack.c.l.b16 %v733
        %v738 = vunpack.c.l.b16 %v734
        %v739 = vpack.c.b16 %v738, %v737
        %741 = vst [vmem:[%s230] sm:$0xff] %v739
        %s742 = sand.u32 %s137, 1
        %s743 = scalar_lea.sflag [#allocation3], %s742
        %s744 = sand.u32 %s137, 1
        %s745 = smul.addr %s744, 8
        %s746 = scalar_lea.vmem [#allocation2], %s745
        // Predicated region
        $region41: #{tpu_custom_call.1} parent=39 // pred_check
          %p747 = pneg %p147
        $region42: #{tpu_custom_call.1} parent=39 // pred_check_branch
          %749 = sbr.rel (%p747) target = $region44
        $region43: #{tpu_custom_call.1} parent=39 // pred_region
          %s750 = smul.u32 2, %s19
          %s751 = ssub.s32 3, %s750
          %p752 = scmp.lt.s32.totalorder %s751, 2
          %s753 = scalar_select %p752, %s751, 2
          %s754 = smul.u32 64, %s753
          %s756 = ssub.s32 128, %s754
          %757 = vsyncadd %s743, %s756
          %p758 = scmp.ne.s32.totalorder 0, %s754
          %s759 = smul.addr %s750, 64
          %s760 = scalar_lea.hbm %s5, %s759
          %s761 = smul.u32 %s753, 4
          %s762 = sshll.u32 %s761, 4
          %s763 = sshll.u32 %s746, 4
          %s764 = int_to_ptr.vmem [resolvable:$true] %s763
          %766 = dma.vmem_to_hbm [thread:$0]  (%p758), %s764, %s762, %s760, %s743
        $region44: #{tpu_custom_call.1} parent=39 // pred_fallthru
          _
      $region40: #{tpu_custom_call.1} parent=5 // pred_fallthru
        _
      %p767 = scmp.le.s32.totalorder 2, %s14
      // Predicated region
      $region45: #{tpu_custom_call.1} parent=5 // pred_check
        %p768 = pneg %p767
      $region46: #{tpu_custom_call.1} parent=5 // pred_check_branch
        %770 = sbr.rel (%p768) target = $region48
      $region47: #{tpu_custom_call.1} parent=5 // pred_region
        %s771 = ssub.s32 %s14, 2
        // Predicated region
        $region49: #{tpu_custom_call.1} parent=47 // pred_check
          %p772 = pneg %p153
        $region50: #{tpu_custom_call.1} parent=47 // pred_check_branch
          %774 = sbr.rel (%p772) target = $region52
        $region51: #{tpu_custom_call.1} parent=47 // pred_region
          %s775 = sand.u32 %s138, 1
          %s776 = scalar_lea.sflag [#allocation3], %s775
          %s777 = sand.u32 %s138, 1
          %s778 = smul.addr %s777, 8
          %s779 = scalar_lea.vmem [#allocation2], %s778
          %780 = dma.done %s776, 128
        $region52: #{tpu_custom_call.1} parent=47 // pred_fallthru
          _
      $region48: #{tpu_custom_call.1} parent=5 // pred_fallthru
        _
    $region6: #{tpu_custom_call.1} parent=1 // loop_footer
      %s18 = sadd.s32 1, %s14
    $region7: #{tpu_custom_call.1} parent=1 // loop_footer_branch
      %13 = sbr.rel target = $region3
    $region8: #{tpu_custom_call.1} parent=1 // loop_exit
      _
    %781 = vsyncpa [#allocation3], 1
    %s782 = scalar_lea.sflag [#allocation3], 1
    %783 = vsyncpa %s782, 1

</llo_original>
